<compile_context>
chip_gen: v7x
topology: tpu7x:2x2x1
jax: 0.10.0
libtpu: 0.0.40
codegen_flags: <defaults>
</compile_context>

<pallas_src>
import jax
import jax.numpy as jnp
from jax.experimental import pallas as pl
from jax.experimental.pallas import tpu as pltpu


# ----------------------------------------------------------------------------
# Fused kernel: LSTM recurrence + fc_out + tanh.
#   x_ref  : (L, B*D)          lanes [t*D:(t+1)*D] hold data[:, t, :]
#   w_ref  : (D+H, 4H)         [W_ih^T ; W_hh^T], gate order i,f,g,o along columns
#   b_ref  : (1, 4H)           b_ih + b_hh
#   wo_ref : (L*B*H//bs, O)    W_out^T
#   bo_ref : (1, O)
#   o_ref  : (bs, O)
# (L = max_len acts as the LSTM batch, B = bs acts as the sequence length.)
# ----------------------------------------------------------------------------
def make_lstm_agg_kernel(*, L, B, D, H, bs, out_size):
    LPB = L // bs  # rows of the (L,B,H) LSTM output feeding each final output row

    def kernel(x_ref, w_ref, b_ref, wo_ref, bo_ref, o_ref):
        x_all = x_ref[...]                                        # (L, B*D)
        w = w_ref[...]                                            # (D+H, 4H)
        bias = b_ref[...]                                         # (1, 4H)

        h = jnp.zeros((L, H), jnp.float32)
        c = jnp.zeros((L, H), jnp.float32)
        hs = []
        # B (= bs) timesteps, tiny and static -> unrolled recurrence.
        # TODO(synk): move to lax.fori_loop + a VMEM scratch for hs if B grows large.
        for t in range(B):
            # single fused MXU call per step: [x_t | h] @ [W_ih^T ; W_hh^T]
            xh = jnp.concatenate([x_all[:, t * D:(t + 1) * D], h], axis=1)   # (L, D+H)
            gates = jnp.dot(xh, w, preferred_element_type=jnp.float32) + bias  # (L, 4H)
            i_g = jax.nn.sigmoid(gates[:, 0 * H:1 * H])
            f_g = jax.nn.sigmoid(gates[:, 1 * H:2 * H])
            g_g = jnp.tanh(gates[:, 2 * H:3 * H])
            o_g = jax.nn.sigmoid(gates[:, 3 * H:4 * H])
            c = f_g * c + i_g * g_g
            h = o_g * jnp.tanh(c)
            hs.append(h)

        # ---- fused fc_out + tanh epilogue: one matmul, one full-block store ----
        # torch: out (L,B,H) --row-major--> reshape(bs,-1).  Row r is the lane-concat
        # over j of hcat[r*LPB + j, :], where hcat[l, b*H:(b+1)*H] = out[l, b, :].
        # Built from static row slices + concats (guaranteed Mosaic lowering, no
        # shape-cast), then a single (bs, L*B*H/bs) x (., O) MXU call.
        hcat = jnp.concatenate(hs, axis=1)                        # (L, B*H)
        flat_rows = []
        for r in range(bs):
            pieces = [hcat[r * LPB + j:r * LPB + j + 1, :] for j in range(LPB)]
            flat_rows.append(jnp.concatenate(pieces, axis=1))     # (1, LPB*B*H)
        flat = jnp.concatenate(flat_rows, axis=0)                 # (bs, L*B*H//bs)
        o_ref[...] = jnp.tanh(
            jnp.dot(flat, wo_ref[...], preferred_element_type=jnp.float32)
            + bo_ref[...])

    return kernel


# ----------------------------------------------------------------------------
# One-time, load-time parameter re-layout (kept OFF the per-call path).
# ----------------------------------------------------------------------------
def prepare_kernel_params(params):
    H4 = params["W_ih"].shape[0]
    w_fused = jnp.concatenate([params["W_ih"].T, params["W_hh"].T], axis=0)  # (D+H, 4H)
    bias = (params["b_ih"] + params["b_hh"]).reshape(1, H4)                  # (1, 4H)
    wo = params["W_out"].T                                                   # (H*max_len, O)
    bo = params["b_out"].reshape(1, -1)                                      # (1, O)
    return w_fused, bias, wo, bo


# ----------------------------------------------------------------------------
# Jitted forward: a free reshape of x + the pallas_call, nothing else.
# ----------------------------------------------------------------------------
@jax.jit
def lstm_aggregator_forward(x, w_fused, bias, wo, bo):
    bs, max_len, D = x.shape
    H = w_fused.shape[1] // 4
    out_size = wo.shape[1]
    L, B = max_len, bs
    assert L % bs == 0
    assert w_fused.shape[0] == D + H and wo.shape[0] == (L * B * H) // bs

    # data.view(max_len, bs, -1) laid out as (L, B*D): pure row-major reshape of the
    # contiguous input -> no data movement, no transpose.
    x2 = jnp.reshape(x, (L, B * D))

    kernel = make_lstm_agg_kernel(L=L, B=B, D=D, H=H, bs=bs, out_size=out_size)
    vmem = pltpu.MemorySpace.VMEM
    cost = pl.CostEstimate(
        flops=2 * B * L * (D + H) * 4 * H + 2 * bs * ((L * B * H) // bs) * out_size,
        transcendentals=5 * B * L * H + bs * out_size,
        bytes_accessed=4 * (L * B * D + (D + H) * 4 * H + 4 * H
                            + ((L * B * H) // bs) * out_size + out_size
                            + bs * out_size),
    )
    res = pl.pallas_call(
        kernel,
        out_shape=jax.ShapeDtypeStruct((bs, out_size), jnp.float32),
        in_specs=[pl.BlockSpec(memory_space=vmem)] * 5,
        out_specs=pl.BlockSpec(memory_space=vmem),
        cost_estimate=cost,
    )(x2, w_fused, bias, wo, bo)

    # dropout: eval mode -> identity.  bn=False and non-tuple input -> fc_in /
    # batch_norm / bidirectional branches are config-gated off.
    return res, None


# ----------------------------------------------------------------------------
# Pure-JAX reference (mirrors PyTorch nn.LSTM gate math exactly).
# ----------------------------------------------------------------------------
def reference_forward(x, params, *, max_len, hidden_size, out_size):
    bs = x.shape[0]
    data = jnp.reshape(x, (max_len, bs, -1))
    L, B, D = data.shape
    H = hidden_size
    W_ih, W_hh = params["W_ih"], params["W_hh"]
    b = params["b_ih"] + params["b_hh"]
    h = jnp.zeros((L, H), jnp.float32)
    c = jnp.zeros((L, H), jnp.float32)
    outs = []
    for t in range(B):
        gates = data[:, t, :] @ W_ih.T + h @ W_hh.T + b
        i_g = jax.nn.sigmoid(gates[:, 0 * H:1 * H])
        f_g = jax.nn.sigmoid(gates[:, 1 * H:2 * H])
        g_g = jnp.tanh(gates[:, 2 * H:3 * H])
        o_g = jax.nn.sigmoid(gates[:, 3 * H:4 * H])
        c = f_g * c + i_g * g_g
        h = o_g * jnp.tanh(c)
        outs.append(h)
    out = jnp.stack(outs, axis=1)                             # (L, B, H)
    flat = jnp.reshape(out, (bs, -1))
    return jnp.tanh(flat @ params["W_out"].T + params["b_out"])


def init_params(key, *, input_size, hidden_size, out_size, max_len):
    ks = jax.random.split(key, 6)
    s = 0.1
    return {
        "W_ih": s * jax.random.normal(ks[0], (4 * hidden_size, input_size), jnp.float32),
        "W_hh": s * jax.random.normal(ks[1], (4 * hidden_size, hidden_size), jnp.float32),
        "b_ih": s * jax.random.normal(ks[2], (4 * hidden_size,), jnp.float32),
        "b_hh": s * jax.random.normal(ks[3], (4 * hidden_size,), jnp.float32),
        "W_out": s * jax.random.normal(ks[4], (out_size, hidden_size * max_len), jnp.float32),
        "b_out": s * jax.random.normal(ks[5], (out_size,), jnp.float32),
    }
    # TODO(synk): fc_in / bidirectional / BatchNorm1d branches of the module are
    # config-gated off in this synthetic setup (non-tuple input, bi=False, bn=False).


if __name__ == "__main__":
    bs, max_len = 2, 8
    input_size, hidden_size, out_size = 32, 32, 16

    key = jax.random.PRNGKey(0)
    kx, kp = jax.random.split(key)
    x = jax.random.normal(kx, (bs, max_len, input_size), jnp.float32)
    params = init_params(kp, input_size=input_size, hidden_size=hidden_size,
                         out_size=out_size, max_len=max_len)

    # One-time parameter conversion ("load time"), kept off the per-call path.
    w_fused, bias, wo, bo = jax.block_until_ready(prepare_kernel_params(params))

    res, _ = lstm_aggregator_forward(x, w_fused, bias, wo, bo)
    res = jax.block_until_ready(res)

    ref = reference_forward(x, params, max_len=max_len,
                            hidden_size=hidden_size, out_size=out_size)

    assert res.shape == (bs, out_size), res.shape
    assert jnp.allclose(res, ref, atol=1e-2, rtol=1e-2), \
        f"max abs err = {jnp.max(jnp.abs(res - ref))}"

    print("KERNEL_OK")
</pallas_src>

<mosaic_0001>
module attributes {stable_mosaic.version = 11 : i64} {
  func.func @kernel(%arg0: memref<8x64xf32, #tpu.memory_space<vmem>>, %arg1: memref<64x128xf32, #tpu.memory_space<vmem>>, %arg2: memref<1x128xf32, #tpu.memory_space<vmem>>, %arg3: memref<256x16xf32, #tpu.memory_space<vmem>>, %arg4: memref<1x16xf32, #tpu.memory_space<vmem>>, %arg5: memref<2x16xf32, #tpu.memory_space<vmem>>) attributes {dimension_semantics = [], scalar_prefetch = 0 : i64, scratch_operands = 0 : i64, tpu.core_type = #tpu.core_type<tc>} {
    %c0 = arith.constant 0 : index
    %c0_0 = arith.constant 0 : index
    %0 = vector.load %arg0[%c0, %c0_0] : memref<8x64xf32, #tpu.memory_space<vmem>>, vector<8x64xf32>
    %c0_1 = arith.constant 0 : index
    %c0_2 = arith.constant 0 : index
    %1 = vector.load %arg1[%c0_1, %c0_2] : memref<64x128xf32, #tpu.memory_space<vmem>>, vector<64x128xf32>
    %c0_3 = arith.constant 0 : index
    %c0_4 = arith.constant 0 : index
    %2 = vector.load %arg2[%c0_3, %c0_4] : memref<1x128xf32, #tpu.memory_space<vmem>>, vector<1x128xf32>
    %cst = arith.constant 0.000000e+00 : f32
    %3 = vector.broadcast %cst : f32 to vector<8x32xf32>
    %cst_5 = arith.constant 0.000000e+00 : f32
    %4 = vector.broadcast %cst_5 : f32 to vector<8x32xf32>
    %5 = vector.extract_strided_slice %0 {offsets = [0, 0], sizes = [8, 32], strides = [1, 1]} : vector<8x64xf32> to vector<8x32xf32>
    %6 = tpu.concatenate %5, %3 in 1 : vector<8x32xf32>, vector<8x32xf32> -> vector<8x64xf32>
    %cst_6 = arith.constant dense<0.000000e+00> : vector<8x128xf32>
    %7 = tpu.matmul %6, %1, %cst_6 {dimension_numbers = #tpu.dot_dimension_numbers<[1], [0], [0], [1], [0, 0, 1, 1], [], []>} : vector<8x64xf32>, vector<64x128xf32>, vector<8x128xf32> -> vector<8x128xf32>
    %8 = vector.broadcast %2 : vector<1x128xf32> to vector<8x128xf32>
    %9 = arith.addf %7, %8 : vector<8x128xf32>
    %10 = vector.extract_strided_slice %9 {offsets = [0, 0], sizes = [8, 32], strides = [1, 1]} : vector<8x128xf32> to vector<8x32xf32>
    %11 = arith.negf %10 : vector<8x32xf32>
    %12 = math.exp %11 : vector<8x32xf32>
    %cst_7 = arith.constant 1.000000e+00 : f32
    %13 = vector.broadcast %cst_7 : f32 to vector<8x32xf32>
    %14 = arith.addf %13, %12 : vector<8x32xf32>
    %15 = arith.divf %13, %14 : vector<8x32xf32>
    %16 = vector.extract_strided_slice %9 {offsets = [0, 32], sizes = [8, 32], strides = [1, 1]} : vector<8x128xf32> to vector<8x32xf32>
    %17 = arith.negf %16 : vector<8x32xf32>
    %18 = math.exp %17 : vector<8x32xf32>
    %cst_8 = arith.constant 1.000000e+00 : f32
    %19 = vector.broadcast %cst_8 : f32 to vector<8x32xf32>
    %20 = arith.addf %19, %18 : vector<8x32xf32>
    %21 = arith.divf %19, %20 : vector<8x32xf32>
    %22 = vector.extract_strided_slice %9 {offsets = [0, 64], sizes = [8, 32], strides = [1, 1]} : vector<8x128xf32> to vector<8x32xf32>
    %23 = math.tanh %22 : vector<8x32xf32>
    %24 = vector.extract_strided_slice %9 {offsets = [0, 96], sizes = [8, 32], strides = [1, 1]} : vector<8x128xf32> to vector<8x32xf32>
    %25 = arith.negf %24 : vector<8x32xf32>
    %26 = math.exp %25 : vector<8x32xf32>
    %cst_9 = arith.constant 1.000000e+00 : f32
    %27 = vector.broadcast %cst_9 : f32 to vector<8x32xf32>
    %28 = arith.addf %27, %26 : vector<8x32xf32>
    %29 = arith.divf %27, %28 : vector<8x32xf32>
    %30 = arith.mulf %21, %4 : vector<8x32xf32>
    %31 = arith.mulf %15, %23 : vector<8x32xf32>
    %32 = arith.addf %30, %31 : vector<8x32xf32>
    %33 = math.tanh %32 : vector<8x32xf32>
    %34 = arith.mulf %29, %33 : vector<8x32xf32>
    %35 = vector.extract_strided_slice %0 {offsets = [0, 32], sizes = [8, 32], strides = [1, 1]} : vector<8x64xf32> to vector<8x32xf32>
    %36 = tpu.concatenate %35, %34 in 1 : vector<8x32xf32>, vector<8x32xf32> -> vector<8x64xf32>
    %cst_10 = arith.constant dense<0.000000e+00> : vector<8x128xf32>
    %37 = tpu.matmul %36, %1, %cst_10 {dimension_numbers = #tpu.dot_dimension_numbers<[1], [0], [0], [1], [0, 0, 1, 1], [], []>} : vector<8x64xf32>, vector<64x128xf32>, vector<8x128xf32> -> vector<8x128xf32>
    %38 = vector.broadcast %2 : vector<1x128xf32> to vector<8x128xf32>
    %39 = arith.addf %37, %38 : vector<8x128xf32>
    %40 = vector.extract_strided_slice %39 {offsets = [0, 0], sizes = [8, 32], strides = [1, 1]} : vector<8x128xf32> to vector<8x32xf32>
    %41 = arith.negf %40 : vector<8x32xf32>
    %42 = math.exp %41 : vector<8x32xf32>
    %cst_11 = arith.constant 1.000000e+00 : f32
    %43 = vector.broadcast %cst_11 : f32 to vector<8x32xf32>
    %44 = arith.addf %43, %42 : vector<8x32xf32>
    %45 = arith.divf %43, %44 : vector<8x32xf32>
    %46 = vector.extract_strided_slice %39 {offsets = [0, 32], sizes = [8, 32], strides = [1, 1]} : vector<8x128xf32> to vector<8x32xf32>
    %47 = arith.negf %46 : vector<8x32xf32>
    %48 = math.exp %47 : vector<8x32xf32>
    %cst_12 = arith.constant 1.000000e+00 : f32
    %49 = vector.broadcast %cst_12 : f32 to vector<8x32xf32>
    %50 = arith.addf %49, %48 : vector<8x32xf32>
    %51 = arith.divf %49, %50 : vector<8x32xf32>
    %52 = vector.extract_strided_slice %39 {offsets = [0, 64], sizes = [8, 32], strides = [1, 1]} : vector<8x128xf32> to vector<8x32xf32>
    %53 = math.tanh %52 : vector<8x32xf32>
    %54 = vector.extract_strided_slice %39 {offsets = [0, 96], sizes = [8, 32], strides = [1, 1]} : vector<8x128xf32> to vector<8x32xf32>
    %55 = arith.negf %54 : vector<8x32xf32>
    %56 = math.exp %55 : vector<8x32xf32>
    %cst_13 = arith.constant 1.000000e+00 : f32
    %57 = vector.broadcast %cst_13 : f32 to vector<8x32xf32>
    %58 = arith.addf %57, %56 : vector<8x32xf32>
    %59 = arith.divf %57, %58 : vector<8x32xf32>
    %60 = arith.mulf %51, %32 : vector<8x32xf32>
    %61 = arith.mulf %45, %53 : vector<8x32xf32>
    %62 = arith.addf %60, %61 : vector<8x32xf32>
    %63 = math.tanh %62 : vector<8x32xf32>
    %64 = arith.mulf %59, %63 : vector<8x32xf32>
    %65 = tpu.concatenate %34, %64 in 1 : vector<8x32xf32>, vector<8x32xf32> -> vector<8x64xf32>
    %66 = vector.extract_strided_slice %65 {offsets = [0, 0], sizes = [1, 64], strides = [1, 1]} : vector<8x64xf32> to vector<1x64xf32>
    %67 = vector.extract_strided_slice %65 {offsets = [1, 0], sizes = [1, 64], strides = [1, 1]} : vector<8x64xf32> to vector<1x64xf32>
    %68 = vector.extract_strided_slice %65 {offsets = [2, 0], sizes = [1, 64], strides = [1, 1]} : vector<8x64xf32> to vector<1x64xf32>
    %69 = vector.extract_strided_slice %65 {offsets = [3, 0], sizes = [1, 64], strides = [1, 1]} : vector<8x64xf32> to vector<1x64xf32>
    %70 = tpu.concatenate %66, %67, %68, %69 in 1 : vector<1x64xf32>, vector<1x64xf32>, vector<1x64xf32>, vector<1x64xf32> -> vector<1x256xf32>
    %71 = vector.extract_strided_slice %65 {offsets = [4, 0], sizes = [1, 64], strides = [1, 1]} : vector<8x64xf32> to vector<1x64xf32>
    %72 = vector.extract_strided_slice %65 {offsets = [5, 0], sizes = [1, 64], strides = [1, 1]} : vector<8x64xf32> to vector<1x64xf32>
    %73 = vector.extract_strided_slice %65 {offsets = [6, 0], sizes = [1, 64], strides = [1, 1]} : vector<8x64xf32> to vector<1x64xf32>
    %74 = vector.extract_strided_slice %65 {offsets = [7, 0], sizes = [1, 64], strides = [1, 1]} : vector<8x64xf32> to vector<1x64xf32>
    %75 = tpu.concatenate %71, %72, %73, %74 in 1 : vector<1x64xf32>, vector<1x64xf32>, vector<1x64xf32>, vector<1x64xf32> -> vector<1x256xf32>
    %76 = tpu.concatenate %70, %75 in 0 : vector<1x256xf32>, vector<1x256xf32> -> vector<2x256xf32>
    %c0_14 = arith.constant 0 : index
    %c0_15 = arith.constant 0 : index
    %77 = vector.load %arg3[%c0_14, %c0_15] : memref<256x16xf32, #tpu.memory_space<vmem>>, vector<256x16xf32>
    %cst_16 = arith.constant dense<0.000000e+00> : vector<2x16xf32>
    %78 = tpu.matmul %76, %77, %cst_16 {dimension_numbers = #tpu.dot_dimension_numbers<[1], [0], [0], [1], [0, 0, 1, 1], [], []>} : vector<2x256xf32>, vector<256x16xf32>, vector<2x16xf32> -> vector<2x16xf32>
    %c0_17 = arith.constant 0 : index
    %c0_18 = arith.constant 0 : index
    %79 = vector.load %arg4[%c0_17, %c0_18] : memref<1x16xf32, #tpu.memory_space<vmem>>, vector<1x16xf32>
    %80 = vector.broadcast %79 : vector<1x16xf32> to vector<2x16xf32>
    %81 = arith.addf %78, %80 : vector<2x16xf32>
    %82 = math.tanh %81 : vector<2x16xf32>
    %c0_19 = arith.constant 0 : index
    %c0_20 = arith.constant 0 : index
    %83 = vector.load %arg5[%c0_19, %c0_20] : memref<2x16xf32, #tpu.memory_space<vmem>>, vector<2x16xf32>
    tpu.vector_store %arg5[%c0_19, %c0_20], %82 {strides = array<i32>} : memref<2x16xf32, #tpu.memory_space<vmem>>, vector<2x16xf32>,
    return
  }
}

</mosaic_0001>

<llo_original>
// kernel: lstm_aggregator_forward.1
$region0: #{lstm_aggregator_forward.1}
  #allocation0 [shape = 'u32[]', space=smem, size = 0x4, offset = 0x4, fixed_abs, tag = 'smem constant byte address 0x4 - core index']
  #allocation1 [shape = 'u32[144,128]{1,0:T(1,128)}', space=vmem, size = 0x12000, scoped, tag = 'internal scratch']
  %s0 = inlined_call_operand.vmem [shape: f32[8,64], index: 0, kind: input, shape index: {}]
  %s1 = inlined_call_operand.vmem [shape: f32[64,128], index: 1, kind: input, shape index: {}]
  %s2 = inlined_call_operand.vmem [shape: f32[1,128], index: 2, kind: input, shape index: {}]
  %s3 = inlined_call_operand.vmem [shape: f32[256,16], index: 3, kind: input, shape index: {}]
  %s4 = inlined_call_operand.vmem [shape: f32[1,16], index: 4, kind: input, shape index: {}]
  %s5 = inlined_call_operand.hbm [shape: f32[2,16], index: 5, kind: output, shape index: {}]
  %s6 = sld [smem:[#allocation0]]
  $region30: #{lstm_aggregator_forward.1} parent=0
    _
  %s8 = ssub.s32 1, %s6
  %s9 = scalar_select 0, %s8, %s6
  $region1: #{lstm_aggregator_forward.1} parent=0
    #allocation2 [shape = 'u8[1024]{0}', space=vmem, size = 0x400, scoped, tag = 'output window, operand 0, single buffered']
    #allocation3 [shape = 's32[1]{0}', space=sflag, size = 0x4, scoped, tag = 'scoped memory for lstm_aggregator_forward.1']
    %10 = vsyncpa [#allocation3], 0
    // Predicated region
    $region2: #{lstm_aggregator_forward.1} parent=1 // pred_check
      _
    $region3: #{lstm_aggregator_forward.1} parent=1 // pred_check_branch
      %12 = sbr.rel (0) target = $region5
    $region4: #{lstm_aggregator_forward.1} parent=1 // pred_region
      _
    $region5: #{lstm_aggregator_forward.1} parent=1 // pred_fallthru
      _
    // Predicated region
    $region6: #{lstm_aggregator_forward.1} parent=1 // pred_check
      _
    $region7: #{lstm_aggregator_forward.1} parent=1 // pred_check_branch
      %14 = sbr.rel (0) target = $region9
    $region8: #{lstm_aggregator_forward.1} parent=1 // pred_region
      _
    $region9: #{lstm_aggregator_forward.1} parent=1 // pred_fallthru
      _
    // Predicated region
    $region10: #{lstm_aggregator_forward.1} parent=1 // pred_check
      _
    $region11: #{lstm_aggregator_forward.1} parent=1 // pred_check_branch
      %16 = sbr.rel (0) target = $region13
    $region12: #{lstm_aggregator_forward.1} parent=1 // pred_region
      _
    $region13: #{lstm_aggregator_forward.1} parent=1 // pred_fallthru
      _
    // Predicated region
    $region14: #{lstm_aggregator_forward.1} parent=1 // pred_check
      _
    $region15: #{lstm_aggregator_forward.1} parent=1 // pred_check_branch
      %18 = sbr.rel (0) target = $region17
    $region16: #{lstm_aggregator_forward.1} parent=1 // pred_region
      _
    $region17: #{lstm_aggregator_forward.1} parent=1 // pred_fallthru
      _
    // Predicated region
    $region18: #{lstm_aggregator_forward.1} parent=1 // pred_check
      _
    $region19: #{lstm_aggregator_forward.1} parent=1 // pred_check_branch
      %20 = sbr.rel (0) target = $region21
    $region20: #{lstm_aggregator_forward.1} parent=1 // pred_region
      _
    $region21: #{lstm_aggregator_forward.1} parent=1 // pred_fallthru
      _
    %v21 = vld [vmem:[%s0] sm:$0xff]
    %v22 = vld [vmem:[%s1] sm:$0xff]
    %v23 = vld [vmem:[%s1 + $0x8] sm:$0xff]
    %v24 = vld [vmem:[%s1 + $0x10] sm:$0xff]
    %v25 = vld [vmem:[%s1 + $0x18] sm:$0xff]
    %v26 = vld [vmem:[%s1 + $0x20] sm:$0xff]
    %v27 = vld [vmem:[%s1 + $0x28] sm:$0xff]
    %v28 = vld [vmem:[%s1 + $0x30] sm:$0xff]
    %v29 = vld [vmem:[%s1 + $0x38] sm:$0xff]
    %v30 = vld [vmem:[%s2] sm:$0x1]
    %vm31 = vcmask 261120
    %v32 = vsel %vm31, %v21, 0.0
    %v34 = vlaneseq
    %v35 = vshrl.u32 %v34, 7
    %v36 = vsub.s32 0, %v35
    %v37 = vrot.slane %v30, %v36
    %vm39 = vcmask 523264
    %v41 = vsel %vm39, %v32, 0
    %43 = vmatprep.subr.mxu0 0.0
    %44 = vmatpush1.msra.mxu0 %v22
    %45 = vmatprep.subr.mxu0 0.0
    %46 = vmatpush1.msra.mxu0 %v23
    %47 = vmatprep.subr.mxu0 0.0
    %48 = vmatpush1.msra.mxu0 %v24
    %49 = vmatprep.subr.mxu0 0.0
    %50 = vmatpush1.msra.mxu0 %v25
    %51 = vmatprep.subr.mxu0 0.0
    %52 = vmatpush1.msra.mxu0 %v26
    %53 = vmatprep.subr.mxu0 0.0
    %54 = vmatpush1.msra.mxu0 %v27
    %55 = vmatprep.subr.mxu0 0.0
    %56 = vmatpush1.msra.mxu0 %v28
    %57 = vmatprep.subr.mxu0 0.0
    %58 = vmatpush1.msra.mxu0 %v29
    %59 = vmatprep.subr.mxu0 0.0
    %60 = vmatpush1.msra.mxu0 0.0
    %61 = vmatprep.subr.mxu0 0.0
    %62 = vmatpush1.msra.mxu0 0.0
    %63 = vmatprep.subr.mxu0 0.0
    %64 = vmatpush1.msra.mxu0 0.0
    %65 = vmatprep.subr.mxu0 0.0
    %66 = vmatpush1.msra.mxu0 0.0
    %67 = vmatprep.subr.mxu0 0.0
    %68 = vmatpush1.msra.mxu0 0.0
    %69 = vmatprep.subr.mxu0 0.0
    %70 = vmatpush1.msra.mxu0 0.0
    %71 = vmatprep.subr.mxu0 0.0
    %72 = vmatpush1.msra.mxu0 0.0
    %73 = vmatprep.subr.mxu0 0.0
    %74 = vmatpush1.msra.mxu0 0.0
    %75 = vmatprep.subr.mxu0 0.0
    %76 = vmatpush1.msra.mxu0 0.0
    %77 = vmatprep.subr.mxu0 0.0
    %78 = vmatpush1.msra.mxu0 0.0
    %79 = vmatprep.subr.mxu0 0.0
    %80 = vmatpush1.msra.mxu0 0.0
    %81 = vmatprep.subr.mxu0 0.0
    %82 = vmatpush1.msra.mxu0 0.0
    %83 = vmatprep.subr.mxu0 0.0
    %84 = vmatpush1.msra.mxu0 0.0
    %85 = vmatprep.subr.mxu0 0.0
    %86 = vmatpush1.msra.mxu0 0.0
    %87 = vmatprep.subr.mxu0 0.0
    %88 = vmatpush1.msra.mxu0 0.0
    %89 = vmatprep.subr.mxu0 0.0
    %90 = vmatpush1.msra.mxu0 0.0
    %91 = vmatprep.subr.mxu0 0.0
    %92 = vmatpush1.msra.mxu0 0.0
    %93 = vmatprep.subr.mxu0 0.0
    %94 = vmatpush1.msra.mxu0 0.0
    %95 = vmatprep.subr.mxu0 0.0
    %96 = vmatpush1.msra.mxu0 0.0
    %97 = vmatprep.subr.mxu0 0.0
    %98 = vmatpush1.msra.mxu0 0.0
    %99 = vmatprep.subr.mxu0 0.0
    %100 = vmatpush1.msra.mxu0 0.0
    %101 = vmatprep.subr.mxu0 0.0
    %102 = vmatpush1.msra.mxu0 0.0
    %103 = vmatprep.subr.mxu0 0.0
    %104 = vmatpush1.msra.mxu0 0.0
    %105 = vmatprep.subr.mxu0 0.0
    %106 = vmatpush1.msra.mxu0 0.0
    %107 = vmatprep.mubr.f32.mxu0 0.0
    %108 = vmatmul.mubr.f32.gmra.mrb[0].mxu0 %v41
    %v109 = vpop.f32.mrb[0].mxu0
    %v110 = vadd.f32 %v37, %v109
    %v111 = vpop.f32.mrb[0].mxu0
    %112 = vdwg.mxu0
    %v113 = vxor.u32 %v110, 2147483648
    %v114 = vmul.f32 %v113, 1.442695
    %v115 = vpow.pop %v114
    %v116 = vadd.f32 %v115, 1.0
    %v117 = vrcp.pop %v116
    %v118 = vmul.f32 1.0, %v117
    %v119 = vtanh.pop %v110
    %v120 = vmul.f32 %v118, 0.0
    %122 = vrot.lane.b32.xlu0 %v119, 64
    %v123 = vpop.permute.xlu0 %122
    %v125 = vmul.f32 %v118, %v123
    %127 = vrot.lane.b32.xlu0 %v125, 32
    %v128 = vpop.permute.xlu0 %127
    %v130 = vadd.f32 %v120, %v128
    %v131 = vtanh.pop %v130
    %133 = vrot.lane.b32.xlu0 %v131, 64
    %v134 = vpop.permute.xlu0 %133
    %v136 = vmul.f32 %v118, %v134
    %138 = vrot.lane.b32.xlu0 %v21, 96
    %v139 = vpop.permute.xlu0 %138
    %142 = vrot.lane.b32.xlu0 %v136, 64
    %v143 = vpop.permute.xlu0 %142
    %v145 = vsel %vm31, %v139, %v143
    %v147 = vsel %vm39, %v145, 0
    %149 = vmatprep.subr.mxu0 0.0
    %150 = vmatpush1.msra.mxu0 %v22
    %151 = vmatprep.subr.mxu0 0.0
    %152 = vmatpush1.msra.mxu0 %v23
    %153 = vmatprep.subr.mxu0 0.0
    %154 = vmatpush1.msra.mxu0 %v24
    %155 = vmatprep.subr.mxu0 0.0
    %156 = vmatpush1.msra.mxu0 %v25
    %157 = vmatprep.subr.mxu0 0.0
    %158 = vmatpush1.msra.mxu0 %v26
    %159 = vmatprep.subr.mxu0 0.0
    %160 = vmatpush1.msra.mxu0 %v27
    %161 = vmatprep.subr.mxu0 0.0
    %162 = vmatpush1.msra.mxu0 %v28
    %163 = vmatprep.subr.mxu0 0.0
    %164 = vmatpush1.msra.mxu0 %v29
    %165 = vmatprep.subr.mxu0 0.0
    %166 = vmatpush1.msra.mxu0 0.0
    %167 = vmatprep.subr.mxu0 0.0
    %168 = vmatpush1.msra.mxu0 0.0
    %169 = vmatprep.subr.mxu0 0.0
    %170 = vmatpush1.msra.mxu0 0.0
    %171 = vmatprep.subr.mxu0 0.0
    %172 = vmatpush1.msra.mxu0 0.0
    %173 = vmatprep.subr.mxu0 0.0
    %174 = vmatpush1.msra.mxu0 0.0
    %175 = vmatprep.subr.mxu0 0.0
    %176 = vmatpush1.msra.mxu0 0.0
    %177 = vmatprep.subr.mxu0 0.0
    %178 = vmatpush1.msra.mxu0 0.0
    %179 = vmatprep.subr.mxu0 0.0
    %180 = vmatpush1.msra.mxu0 0.0
    %181 = vmatprep.subr.mxu0 0.0
    %182 = vmatpush1.msra.mxu0 0.0
    %183 = vmatprep.subr.mxu0 0.0
    %184 = vmatpush1.msra.mxu0 0.0
    %185 = vmatprep.subr.mxu0 0.0
    %186 = vmatpush1.msra.mxu0 0.0
    %187 = vmatprep.subr.mxu0 0.0
    %188 = vmatpush1.msra.mxu0 0.0
    %189 = vmatprep.subr.mxu0 0.0
    %190 = vmatpush1.msra.mxu0 0.0
    %191 = vmatprep.subr.mxu0 0.0
    %192 = vmatpush1.msra.mxu0 0.0
    %193 = vmatprep.subr.mxu0 0.0
    %194 = vmatpush1.msra.mxu0 0.0
    %195 = vmatprep.subr.mxu0 0.0
    %196 = vmatpush1.msra.mxu0 0.0
    %197 = vmatprep.subr.mxu0 0.0
    %198 = vmatpush1.msra.mxu0 0.0
    %199 = vmatprep.subr.mxu0 0.0
    %200 = vmatpush1.msra.mxu0 0.0
    %201 = vmatprep.subr.mxu0 0.0
    %202 = vmatpush1.msra.mxu0 0.0
    %203 = vmatprep.subr.mxu0 0.0
    %204 = vmatpush1.msra.mxu0 0.0
    %205 = vmatprep.subr.mxu0 0.0
    %206 = vmatpush1.msra.mxu0 0.0
    %207 = vmatprep.subr.mxu0 0.0
    %208 = vmatpush1.msra.mxu0 0.0
    %209 = vmatprep.subr.mxu0 0.0
    %210 = vmatpush1.msra.mxu0 0.0
    %211 = vmatprep.subr.mxu0 0.0
    %212 = vmatpush1.msra.mxu0 0.0
    %213 = vmatprep.mubr.f32.mxu0 0.0
    %214 = vmatmul.mubr.f32.gmra.mrb[0].mxu0 %v147
    %v215 = vpop.f32.mrb[0].mxu0
    %v216 = vadd.f32 %v37, %v215
    %v217 = vpop.f32.mrb[0].mxu0
    %218 = vdwg.mxu0
    %v219 = vxor.u32 %v216, 2147483648
    %v220 = vmul.f32 %v219, 1.442695
    %v221 = vpow.pop %v220
    %v222 = vadd.f32 %v221, 1.0
    %v223 = vrcp.pop %v222
    %v224 = vmul.f32 1.0, %v223
    %v225 = vtanh.pop %v216
    %v226 = vmul.f32 %v224, %v130
    %228 = vrot.lane.b32.xlu0 %v225, 64
    %v229 = vpop.permute.xlu0 %228
    %v231 = vmul.f32 %v224, %v229
    %233 = vrot.lane.b32.xlu0 %v231, 32
    %v234 = vpop.permute.xlu0 %233
    %v236 = vadd.f32 %v226, %v234
    %v237 = vtanh.pop %v236
    %239 = vrot.lane.b32.xlu0 %v237, 64
    %v240 = vpop.permute.xlu0 %239
    %v242 = vmul.f32 %v224, %v240
    %243 = vrot.lane.b32.xlu0 %v136, 32
    %v244 = vpop.permute.xlu0 %243
    %247 = vrot.lane.b32.xlu0 %v242, 64
    %v248 = vpop.permute.xlu0 %247
    %v250 = vsel %vm31, %v244, %v248
    %v252 = vrot.slane %v250, 1
    %253 = vrot.lane.b32.xlu0 %v252, 64
    %v254 = vpop.permute.xlu0 %253
    %v256 = vrot.slane %v250, 2
    %v258 = vrot.slane %v250, 3
    %259 = vrot.lane.b32.xlu0 %v258, 64
    %v260 = vpop.permute.xlu0 %259
    %v262 = vsel %vm39, %v250, %v254
    %v263 = vsel %vm39, %v256, %v260
    %v266 = vrot.slane %v262, 3
    %v267 = vrot.slane %v263, 3
    %vm270 = vcmask 1040384
    %v271 = vsel %vm270, %v262, %v266
    %v272 = vsel %vm270, %v263, %v267
    %v273 = vld [vmem:[%s3] sm:$0xff]
    %v274 = vld [vmem:[%s3 + $0x8] sm:$0xff]
    %v275 = vld [vmem:[%s3 + $0x10] sm:$0xff]
    %v276 = vld [vmem:[%s3 + $0x18] sm:$0xff]
    %v277 = vld [vmem:[%s3 + $0x20] sm:$0xff]
    %v278 = vld [vmem:[%s3 + $0x28] sm:$0xff]
    %v279 = vld [vmem:[%s3 + $0x30] sm:$0xff]
    %v280 = vld [vmem:[%s3 + $0x38] sm:$0xff]
    %v281 = vld [vmem:[%s3 + $0x40] sm:$0xff]
    %v282 = vld [vmem:[%s3 + $0x48] sm:$0xff]
    %v283 = vld [vmem:[%s3 + $0x50] sm:$0xff]
    %v284 = vld [vmem:[%s3 + $0x58] sm:$0xff]
    %v285 = vld [vmem:[%s3 + $0x60] sm:$0xff]
    %v286 = vld [vmem:[%s3 + $0x68] sm:$0xff]
    %v287 = vld [vmem:[%s3 + $0x70] sm:$0xff]
    %v288 = vld [vmem:[%s3 + $0x78] sm:$0xff]
    %v289 = vld [vmem:[%s3 + $0x80] sm:$0xff]
    %v290 = vld [vmem:[%s3 + $0x88] sm:$0xff]
    %v291 = vld [vmem:[%s3 + $0x90] sm:$0xff]
    %v292 = vld [vmem:[%s3 + $0x98] sm:$0xff]
    %v293 = vld [vmem:[%s3 + $0xa0] sm:$0xff]
    %v294 = vld [vmem:[%s3 + $0xa8] sm:$0xff]
    %v295 = vld [vmem:[%s3 + $0xb0] sm:$0xff]
    %v296 = vld [vmem:[%s3 + $0xb8] sm:$0xff]
    %v297 = vld [vmem:[%s3 + $0xc0] sm:$0xff]
    %v298 = vld [vmem:[%s3 + $0xc8] sm:$0xff]
    %v299 = vld [vmem:[%s3 + $0xd0] sm:$0xff]
    %v300 = vld [vmem:[%s3 + $0xd8] sm:$0xff]
    %v301 = vld [vmem:[%s3 + $0xe0] sm:$0xff]
    %v302 = vld [vmem:[%s3 + $0xe8] sm:$0xff]
    %v303 = vld [vmem:[%s3 + $0xf0] sm:$0xff]
    %v304 = vld [vmem:[%s3 + $0xf8] sm:$0xff]
    %v305 = vld [vmem:[%s4] sm:$0x1]
    %v307 = vlaneseq
    %v308 = vshrl.u32 %v307, 7
    %v309 = vsub.s32 0, %v308
    %v310 = vrot.slane %v305, %v309
    %312 = vmatprep.subr.mxu0 0.0
    %313 = vmatpush1.msra.mxu0 %v273
    %314 = vmatprep.subr.mxu0 0.0
    %315 = vmatpush1.msra.mxu0 %v274
    %316 = vmatprep.subr.mxu0 0.0
    %317 = vmatpush1.msra.mxu0 %v275
    %318 = vmatprep.subr.mxu0 0.0
    %319 = vmatpush1.msra.mxu0 %v276
    %320 = vmatprep.subr.mxu0 0.0
    %321 = vmatpush1.msra.mxu0 %v277
    %322 = vmatprep.subr.mxu0 0.0
    %323 = vmatpush1.msra.mxu0 %v278
    %324 = vmatprep.subr.mxu0 0.0
    %325 = vmatpush1.msra.mxu0 %v279
    %326 = vmatprep.subr.mxu0 0.0
    %327 = vmatpush1.msra.mxu0 %v280
    %328 = vmatprep.subr.mxu0 0.0
    %329 = vmatpush1.msra.mxu0 %v281
    %330 = vmatprep.subr.mxu0 0.0
    %331 = vmatpush1.msra.mxu0 %v282
    %332 = vmatprep.subr.mxu0 0.0
    %333 = vmatpush1.msra.mxu0 %v283
    %334 = vmatprep.subr.mxu0 0.0
    %335 = vmatpush1.msra.mxu0 %v284
    %336 = vmatprep.subr.mxu0 0.0
    %337 = vmatpush1.msra.mxu0 %v285
    %338 = vmatprep.subr.mxu0 0.0
    %339 = vmatpush1.msra.mxu0 %v286
    %340 = vmatprep.subr.mxu0 0.0
    %341 = vmatpush1.msra.mxu0 %v287
    %342 = vmatprep.subr.mxu0 0.0
    %343 = vmatpush1.msra.mxu0 %v288
    %344 = vmatprep.subr.mxu0 0.0
    %345 = vmatpush1.msra.mxu0 %v289
    %346 = vmatprep.subr.mxu0 0.0
    %347 = vmatpush1.msra.mxu0 %v290
    %348 = vmatprep.subr.mxu0 0.0
    %349 = vmatpush1.msra.mxu0 %v291
    %350 = vmatprep.subr.mxu0 0.0
    %351 = vmatpush1.msra.mxu0 %v292
    %352 = vmatprep.subr.mxu0 0.0
    %353 = vmatpush1.msra.mxu0 %v293
    %354 = vmatprep.subr.mxu0 0.0
    %355 = vmatpush1.msra.mxu0 %v294
    %356 = vmatprep.subr.mxu0 0.0
    %357 = vmatpush1.msra.mxu0 %v295
    %358 = vmatprep.subr.mxu0 0.0
    %359 = vmatpush1.msra.mxu0 %v296
    %360 = vmatprep.subr.mxu0 0.0
    %361 = vmatpush1.msra.mxu0 %v297
    %362 = vmatprep.subr.mxu0 0.0
    %363 = vmatpush1.msra.mxu0 %v298
    %364 = vmatprep.subr.mxu0 0.0
    %365 = vmatpush1.msra.mxu0 %v299
    %366 = vmatprep.subr.mxu0 0.0
    %367 = vmatpush1.msra.mxu0 %v300
    %368 = vmatprep.subr.mxu0 0.0
    %369 = vmatpush1.msra.mxu0 %v301
    %370 = vmatprep.subr.mxu0 0.0
    %371 = vmatpush1.msra.mxu0 %v302
    %372 = vmatprep.subr.mxu0 0.0
    %373 = vmatpush1.msra.mxu0 %v303
    %374 = vmatprep.subr.mxu0 0.0
    %375 = vmatpush1.msra.mxu0 %v304
    %376 = vmatprep.mubr.f32.mxu0 %v272
    %377 = vmatmul.mubr.f32.gmra.mrb[0].mxu0 %v271
    %v378 = vpop.f32.mrb[0].mxu0
    %v379 = vadd.f32 %v310, %v378
    %v380 = vpop.f32.mrb[0].mxu0
    %381 = vdwg.mxu0
    %v382 = vtanh.pop %v379
    %vm383 = vcmask 123904
    %384 = vst.msk [vmem:[#allocation2] sm:$0x3] %vm383, %v382
    // Predicated region
    $region22: #{lstm_aggregator_forward.1} parent=1 // pred_check
      _
    $region23: #{lstm_aggregator_forward.1} parent=1 // pred_check_branch
      %386 = sbr.rel (0) target = $region25
    $region24: #{lstm_aggregator_forward.1} parent=1 // pred_region
      %s388 = ssub.s32 32, 32
      %389 = vsyncadd [#allocation3], %s388
      %s391 = sshll.u32 [#allocation2], 4
      %s392 = int_to_ptr.vmem [resolvable:$true] %s391
      %394 = dma.vmem_to_hbm [thread:$0]  %s392, 32, %s5, [#allocation3]
    $region25: #{lstm_aggregator_forward.1} parent=1 // pred_fallthru
      _
    // Predicated region
    $region26: #{lstm_aggregator_forward.1} parent=1 // pred_check
      _
    $region27: #{lstm_aggregator_forward.1} parent=1 // pred_check_branch
      %396 = sbr.rel (0) target = $region29
    $region28: #{lstm_aggregator_forward.1} parent=1 // pred_region
      %397 = dma.done [#allocation3], 32
    $region29: #{lstm_aggregator_forward.1} parent=1 // pred_fallthru
      _
    %398 = vsyncpa [#allocation3], 1

</llo_original>
